<compile_context>
chip_gen: v5e
topology: v5e:2x2
jax: 0.10.0
libtpu: 0.0.40
codegen_flags: <defaults>
</compile_context>

<pallas_src>
import jax
import jax.numpy as jnp
from jax.experimental import pallas as pl
from jax.experimental.pallas import tpu as pltpu

LANE = 128      # lane width
SUBLANE = 8     # f32 sublane height


def _round_up(x, m):
    return ((x + m - 1) // m) * m


def ddpg_actor_kernel(x_ref, w1_ref, b1_ref, w2_ref, b2_ref, w3_ref, b3_ref, o_ref):
    # x_ref: [tm, state_dim] f32 (narrow, unpadded feature dim)
    # w1: [state_dim, hp] bf16 ; w2: [hp, hp] bf16 ; w3: [hp, action_dim] bf16
    # b1/b2: [1, hp] f32 ; b3: [1, action_dim] f32 ; o_ref: [tm, action_dim] f32
    x = x_ref[...].astype(jnp.bfloat16)          # in-kernel cast (HBM input stays f32/narrow)
    # l1 + ReLU   (bf16 x bf16 -> f32 accumulate on MXU)
    h = jnp.dot(x, w1_ref[...], preferred_element_type=jnp.float32) + b1_ref[...]
    h = jnp.maximum(h, 0.0)
    # l2 + ReLU
    h = jnp.dot(h.astype(jnp.bfloat16), w2_ref[...],
                preferred_element_type=jnp.float32) + b2_ref[...]
    h = jnp.maximum(h, 0.0)
    # l3 (no activation / no tanh / no max_action scaling, matching the PyTorch forward)
    out = jnp.dot(h.astype(jnp.bfloat16), w3_ref[...],
                  preferred_element_type=jnp.float32) + b3_ref[...]
    o_ref[...] = out.astype(o_ref.dtype)


def pad_params(params):
    """Zero-pad ONLY the hidden dim up to 128 lanes; weights -> bf16, biases -> f32.

    Zero-padding the hidden dim is exact: zero weight columns + zero bias entries give
    ReLU(0)=0 in padded lanes, and zero weight rows contribute nothing downstream.
    The state (contraction of l1) and action (output of l3) dims stay unpadded.
    """
    w1, b1, w2, b2, w3, b3 = (params["w1"], params["b1"], params["w2"],
                              params["b2"], params["w3"], params["b3"])
    s, h = w1.shape
    a = w3.shape[1]
    hp = _round_up(h, LANE)
    dh = hp - h

    return {
        "w1": jnp.pad(w1, ((0, 0), (0, dh))).astype(jnp.bfloat16),
        "b1": jnp.pad(b1, ((0, 0), (0, dh))).astype(jnp.float32),
        "w2": jnp.pad(w2, ((0, dh), (0, dh))).astype(jnp.bfloat16),
        "b2": jnp.pad(b2, ((0, 0), (0, dh))).astype(jnp.float32),
        "w3": jnp.pad(w3, ((0, dh), (0, 0))).astype(jnp.bfloat16),
        "b3": b3.astype(jnp.float32),
        "state_dim": s, "action_dim": a,
    }


def ddpg_actor_forward(state, padded_params, *, block_m=512, max_action=1.0):
    """state: [B, state_dim] float32 ; padded_params: output of pad_params()."""
    del max_action  # metadata only; the reference forward applies no tanh/scaling
    p = padded_params
    w1, b1, w2, b2, w3, b3 = p["w1"], p["b1"], p["w2"], p["b2"], p["w3"], p["b3"]
    B, s = state.shape
    assert s == w1.shape[0], (s, w1.shape)
    hp = w1.shape[1]
    a = w3.shape[1]

    weight_args = (w1, b1, w2, b2, w3, b3)
    # Whole-array blocks, same block every grid step -> weights stay resident in VMEM.
    # (Could be single-buffered via pipeline_mode=pl.Buffered(1); omitted — ~100 KiB.)
    weight_specs = [pl.BlockSpec(w.shape, lambda i: (0, 0)) for w in weight_args]

    flops_per_row = 2 * (s * hp + hp * hp + hp * a)
    weight_bytes = (s * hp + hp * hp + hp * a) * 2 + (hp + hp + a) * 4
    compiler_params = pltpu.CompilerParams(dimension_semantics=("parallel",))

    # Batch tile: multiple of 8 sublanes, capped at block_m (per-step overhead is what
    # matters; VMEM is a non-issue at these sizes on v5e/v6e/v7x). ceil(B/2) keeps the
    # grid >= 2 for mid/large batches so v7x's two TensorCores both get work.
    tm = max(SUBLANE, min(block_m, _round_up(-(-B // 2), SUBLANE)))
    b_pad = _round_up(B, tm)
    grid_m = b_pad // tm

    if grid_m == 1:
        # Tiny-batch fast path: whole arrays as single blocks (always layout-legal),
        # no batch padding and no output slice -> one XLA dispatch total.
        cost = pl.CostEstimate(flops=flops_per_row * B, transcendentals=0,
                               bytes_accessed=B * s * 4 + weight_bytes + B * a * 4)
        return pl.pallas_call(
            ddpg_actor_kernel,
            out_shape=jax.ShapeDtypeStruct((B, a), jnp.float32),
            grid=(1,),
            in_specs=[pl.BlockSpec((B, s), lambda i: (0, 0))] + weight_specs,
            out_specs=pl.BlockSpec((B, a), lambda i: (0, 0)),
            compiler_params=compiler_params,
            cost_estimate=cost,
        )(state, *weight_args)

    # Tiled path: pad only the batch axis (feature axis stays narrow f32).
    x = state if b_pad == B else jnp.pad(state, ((0, b_pad - B), (0, 0)))
    cost = pl.CostEstimate(flops=flops_per_row * b_pad, transcendentals=0,
                           bytes_accessed=b_pad * s * 4 + weight_bytes + b_pad * a * 4)
    out = pl.pallas_call(
        ddpg_actor_kernel,
        out_shape=jax.ShapeDtypeStruct((b_pad, a), jnp.float32),
        grid=(grid_m,),
        in_specs=[pl.BlockSpec((tm, s), lambda i: (i, 0))] + weight_specs,
        out_specs=pl.BlockSpec((tm, a), lambda i: (i, 0)),
        compiler_params=compiler_params,
        cost_estimate=cost,
    )(x, *weight_args)
    return out if b_pad == B else out[:B]


def init_params(key, state_dim, action_dim, hidden_dim=32):
    """Deterministic init mimicking nn.Linear's U(-1/sqrt(fan_in), 1/sqrt(fan_in)).

    Weights stored transposed vs PyTorch: [in_features, out_features]."""
    ks = jax.random.split(key, 6)

    def linear(kw, kb, fan_in, fan_out):
        bound = 1.0 / jnp.sqrt(jnp.float32(fan_in))
        w = jax.random.uniform(kw, (fan_in, fan_out), jnp.float32, -bound, bound)
        b = jax.random.uniform(kb, (1, fan_out), jnp.float32, -bound, bound)
        return w, b

    w1, b1 = linear(ks[0], ks[1], state_dim, hidden_dim)
    w2, b2 = linear(ks[2], ks[3], hidden_dim, hidden_dim)
    w3, b3 = linear(ks[4], ks[5], hidden_dim, action_dim)
    return {"w1": w1, "b1": b1, "w2": w2, "b2": b2, "w3": w3, "b3": b3}


def reference_forward(state, params):
    h = jnp.maximum(state @ params["w1"] + params["b1"], 0.0)
    h = jnp.maximum(h @ params["w2"] + params["b2"], 0.0)
    return h @ params["w3"] + params["b3"]


if __name__ == "__main__":
    state_dim = 8
    action_dim = 4
    hidden_dim = 32
    max_action = 1.0  # unused by forward(), kept as metadata

    key = jax.random.PRNGKey(0)
    k_state, k_params, k_state2 = jax.random.split(key, 3)

    params = init_params(k_params, state_dim, action_dim, hidden_dim)
    padded = pad_params(params)

    # 1) Tiny batch (fast path, single whole-array block, no padding).
    batch = 2
    state = jax.random.normal(k_state, (batch, state_dim), jnp.float32)
    out = ddpg_actor_forward(state, padded, max_action=max_action)
    out = jax.block_until_ready(out)
    ref = reference_forward(state, params)
    assert out.shape == (batch, action_dim), out.shape
    # bf16 MXU inputs with f32 accumulation -> tolerate bf16-level relative error.
    assert jnp.allclose(out, ref, atol=3e-2, rtol=3e-2), (out, ref)

    # 2) Larger batch (tiled path, grid of 2 tiles -> exercises the parallel batch axis).
    batch2 = 48
    state2 = jax.random.normal(k_state2, (batch2, state_dim), jnp.float32)
    out2 = ddpg_actor_forward(state2, padded, max_action=max_action)
    out2 = jax.block_until_ready(out2)
    ref2 = reference_forward(state2, params)
    assert out2.shape == (batch2, action_dim), out2.shape
    assert jnp.allclose(out2, ref2, atol=3e-2, rtol=3e-2), (out2, ref2)

    print("KERNEL_OK")
</pallas_src>

<mosaic_0001>
module attributes {stable_mosaic.version = 11 : i64} {
  func.func @ddpg_actor_kernel(%arg0: i32, %arg1: memref<2x8xf32, #tpu.memory_space<vmem>>, %arg2: memref<8x128xbf16, #tpu.memory_space<vmem>>, %arg3: memref<1x128xf32, #tpu.memory_space<vmem>>, %arg4: memref<128x128xbf16, #tpu.memory_space<vmem>>, %arg5: memref<1x128xf32, #tpu.memory_space<vmem>>, %arg6: memref<128x4xbf16, #tpu.memory_space<vmem>>, %arg7: memref<1x4xf32, #tpu.memory_space<vmem>>, %arg8: memref<2x4xf32, #tpu.memory_space<vmem>>) attributes {dimension_semantics = [#tpu.dimension_semantics<parallel>], iteration_bounds = array<i64: 1>, scalar_prefetch = 0 : i64, scratch_operands = 0 : i64, tpu.core_type = #tpu.core_type<tc>, window_params = [{pipeline_mode = #tpu.pipeline_mode<synchronous>, transform_indices = @transform_0, window_bounds = array<i64: 2, 8>}, {pipeline_mode = #tpu.pipeline_mode<synchronous>, transform_indices = @transform_1, window_bounds = array<i64: 8, 128>}, {pipeline_mode = #tpu.pipeline_mode<synchronous>, transform_indices = @transform_2, window_bounds = array<i64: 1, 128>}, {pipeline_mode = #tpu.pipeline_mode<synchronous>, transform_indices = @transform_3, window_bounds = array<i64: 128, 128>}, {pipeline_mode = #tpu.pipeline_mode<synchronous>, transform_indices = @transform_4, window_bounds = array<i64: 1, 128>}, {pipeline_mode = #tpu.pipeline_mode<synchronous>, transform_indices = @transform_5, window_bounds = array<i64: 128, 4>}, {pipeline_mode = #tpu.pipeline_mode<synchronous>, transform_indices = @transform_6, window_bounds = array<i64: 1, 4>}, {pipeline_mode = #tpu.pipeline_mode<synchronous>, transform_indices = @transform_7, window_bounds = array<i64: 2, 4>}]} {
    %c0 = arith.constant 0 : index
    %c0_0 = arith.constant 0 : index
    %0 = vector.load %arg1[%c0, %c0_0] : memref<2x8xf32, #tpu.memory_space<vmem>>, vector<2x8xf32>
    %1 = arith.truncf %0 : vector<2x8xf32> to vector<2x8xbf16>
    %c0_1 = arith.constant 0 : index
    %c0_2 = arith.constant 0 : index
    %2 = vector.load %arg2[%c0_1, %c0_2] : memref<8x128xbf16, #tpu.memory_space<vmem>>, vector<8x128xbf16>
    %cst = arith.constant dense<0.000000e+00> : vector<2x128xf32>
    %3 = tpu.matmul %1, %2, %cst {dimension_numbers = #tpu.dot_dimension_numbers<[1], [0], [0], [1], [0, 0, 1, 1], [], []>} : vector<2x8xbf16>, vector<8x128xbf16>, vector<2x128xf32> -> vector<2x128xf32>
    %c0_3 = arith.constant 0 : index
    %c0_4 = arith.constant 0 : index
    %4 = vector.load %arg3[%c0_3, %c0_4] : memref<1x128xf32, #tpu.memory_space<vmem>>, vector<1x128xf32>
    %5 = vector.broadcast %4 : vector<1x128xf32> to vector<2x128xf32>
    %6 = arith.addf %3, %5 : vector<2x128xf32>
    %cst_5 = arith.constant 0.000000e+00 : f32
    %7 = vector.broadcast %cst_5 : f32 to vector<2x128xf32>
    %8 = arith.maximumf %6, %7 : vector<2x128xf32>
    %9 = arith.truncf %8 : vector<2x128xf32> to vector<2x128xbf16>
    %c0_6 = arith.constant 0 : index
    %c0_7 = arith.constant 0 : index
    %10 = vector.load %arg4[%c0_6, %c0_7] : memref<128x128xbf16, #tpu.memory_space<vmem>>, vector<128x128xbf16>
    %cst_8 = arith.constant dense<0.000000e+00> : vector<2x128xf32>
    %11 = tpu.matmul %9, %10, %cst_8 {dimension_numbers = #tpu.dot_dimension_numbers<[1], [0], [0], [1], [0, 0, 1, 1], [], []>} : vector<2x128xbf16>, vector<128x128xbf16>, vector<2x128xf32> -> vector<2x128xf32>
    %c0_9 = arith.constant 0 : index
    %c0_10 = arith.constant 0 : index
    %12 = vector.load %arg5[%c0_9, %c0_10] : memref<1x128xf32, #tpu.memory_space<vmem>>, vector<1x128xf32>
    %13 = vector.broadcast %12 : vector<1x128xf32> to vector<2x128xf32>
    %14 = arith.addf %11, %13 : vector<2x128xf32>
    %cst_11 = arith.constant 0.000000e+00 : f32
    %15 = vector.broadcast %cst_11 : f32 to vector<2x128xf32>
    %16 = arith.maximumf %14, %15 : vector<2x128xf32>
    %17 = arith.truncf %16 : vector<2x128xf32> to vector<2x128xbf16>
    %c0_12 = arith.constant 0 : index
    %c0_13 = arith.constant 0 : index
    %18 = vector.load %arg6[%c0_12, %c0_13] : memref<128x4xbf16, #tpu.memory_space<vmem>>, vector<128x4xbf16>
    %cst_14 = arith.constant dense<0.000000e+00> : vector<2x4xf32>
    %19 = tpu.matmul %17, %18, %cst_14 {dimension_numbers = #tpu.dot_dimension_numbers<[1], [0], [0], [1], [0, 0, 1, 1], [], []>} : vector<2x128xbf16>, vector<128x4xbf16>, vector<2x4xf32> -> vector<2x4xf32>
    %c0_15 = arith.constant 0 : index
    %c0_16 = arith.constant 0 : index
    %20 = vector.load %arg7[%c0_15, %c0_16] : memref<1x4xf32, #tpu.memory_space<vmem>>, vector<1x4xf32>
    %21 = vector.broadcast %20 : vector<1x4xf32> to vector<2x4xf32>
    %22 = arith.addf %19, %21 : vector<2x4xf32>
    %c0_17 = arith.constant 0 : index
    %c0_18 = arith.constant 0 : index
    %23 = vector.load %arg8[%c0_17, %c0_18] : memref<2x4xf32, #tpu.memory_space<vmem>>, vector<2x4xf32>
    tpu.vector_store %arg8[%c0_17, %c0_18], %22 {strides = array<i32>} : memref<2x4xf32, #tpu.memory_space<vmem>>, vector<2x4xf32>,
    return
  }
  func.func @transform_0(%arg0: i32) -> (i32, i32) {
    %c0_i32 = arith.constant 0 : i32
    %c0_i32_0 = arith.constant 0 : i32
    %c0_i32_1 = arith.constant 0 : i32
    return %c0_i32, %c0_i32_0 : i32, i32
  }
  func.func @transform_1(%arg0: i32) -> (i32, i32) {
    %c0_i32 = arith.constant 0 : i32
    %c0_i32_0 = arith.constant 0 : i32
    %c0_i32_1 = arith.constant 0 : i32
    return %c0_i32, %c0_i32_0 : i32, i32
  }
  func.func @transform_2(%arg0: i32) -> (i32, i32) {
    %c0_i32 = arith.constant 0 : i32
    %c0_i32_0 = arith.constant 0 : i32
    %c0_i32_1 = arith.constant 0 : i32
    return %c0_i32, %c0_i32_0 : i32, i32
  }
  func.func @transform_3(%arg0: i32) -> (i32, i32) {
    %c0_i32 = arith.constant 0 : i32
    %c0_i32_0 = arith.constant 0 : i32
    %c0_i32_1 = arith.constant 0 : i32
    return %c0_i32, %c0_i32_0 : i32, i32
  }
  func.func @transform_4(%arg0: i32) -> (i32, i32) {
    %c0_i32 = arith.constant 0 : i32
    %c0_i32_0 = arith.constant 0 : i32
    %c0_i32_1 = arith.constant 0 : i32
    return %c0_i32, %c0_i32_0 : i32, i32
  }
  func.func @transform_5(%arg0: i32) -> (i32, i32) {
    %c0_i32 = arith.constant 0 : i32
    %c0_i32_0 = arith.constant 0 : i32
    %c0_i32_1 = arith.constant 0 : i32
    return %c0_i32, %c0_i32_0 : i32, i32
  }
  func.func @transform_6(%arg0: i32) -> (i32, i32) {
    %c0_i32 = arith.constant 0 : i32
    %c0_i32_0 = arith.constant 0 : i32
    %c0_i32_1 = arith.constant 0 : i32
    return %c0_i32, %c0_i32_0 : i32, i32
  }
  func.func @transform_7(%arg0: i32) -> (i32, i32) {
    %c0_i32 = arith.constant 0 : i32
    %c0_i32_0 = arith.constant 0 : i32
    %c0_i32_1 = arith.constant 0 : i32
    return %c0_i32, %c0_i32_0 : i32, i32
  }
}

</mosaic_0001>

<llo_original>
// kernel: tpu_custom_call.1
$region0: #{tpu_custom_call.1}
  #allocation0 [shape = 'u32[]', space=smem, size = 0x4, offset = 0x4, fixed_abs, tag = 'smem constant byte address 0x4 - core index']
  #allocation1 [shape = 'u32[72,128]{1,0:T(1,128)}', space=vmem, size = 0x9000, scoped, tag = 'internal scratch']
  %s0 = inlined_call_operand.hbm [shape: f32[2,8], index: 0, kind: input, shape index: {}]
  %s1 = inlined_call_operand.vmem [shape: bf16[8,128], index: 1, kind: input, shape index: {}]
  %s2 = inlined_call_operand.hbm [shape: f32[1,128], index: 2, kind: input, shape index: {}]
  %s3 = inlined_call_operand.vmem [shape: bf16[128,128], index: 3, kind: input, shape index: {}]
  %s4 = inlined_call_operand.hbm [shape: f32[1,128], index: 4, kind: input, shape index: {}]
  %s5 = inlined_call_operand.vmem [shape: bf16[128,4], index: 5, kind: input, shape index: {}]
  %s6 = inlined_call_operand.vmem [shape: f32[1,4], index: 6, kind: input, shape index: {}]
  %s7 = inlined_call_operand.hbm [shape: f32[2,4], index: 7, kind: output, shape index: {}]
  %s8 = sld [smem:[#allocation0]]
  $region50: #{tpu_custom_call.1} parent=0
    _
  %s10 = ssub.s32 1, %s8
  %s11 = scalar_select 0, %s10, %s8
  $region1: #{tpu_custom_call.1} parent=0
    #allocation2 [shape = 'u8[1024]{0}', space=vmem, size = 0x400, scoped, tag = 'input window, operand 0, single buffered']
    #allocation3 [shape = 's32[1]{0}', space=sflag, size = 0x4, scoped, tag = 'scoped memory for tpu_custom_call.1']
    #allocation4 [shape = 's32[1]{0}', space=sflag, size = 0x4, scoped, tag = 'scoped memory for tpu_custom_call.1']
    #allocation5 [shape = 'u8[512]{0}', space=vmem, size = 0x400, scoped, tag = 'input window, operand 2, single buffered']
    #allocation6 [shape = 's32[1]{0}', space=sflag, size = 0x4, scoped, tag = 'scoped memory for tpu_custom_call.1']
    #allocation7 [shape = 'u8[512]{0}', space=vmem, size = 0x400, scoped, tag = 'input window, operand 4, single buffered']
    #allocation8 [shape = 'u8[1024]{0}', space=vmem, size = 0x400, scoped, tag = 'output window, operand 0, single buffered']
    %12 = vsyncpa [#allocation3], 0
    %13 = vsyncpa [#allocation6], 0
    %14 = vsyncpa [#allocation4], 0
    // Predicated region
    $region2: #{tpu_custom_call.1} parent=1 // pred_check
      _
    $region3: #{tpu_custom_call.1} parent=1 // pred_check_branch
      %16 = sbr.rel (0) target = $region5
    $region4: #{tpu_custom_call.1} parent=1 // pred_region
      %18 = vsyncadd [#allocation3], 0
      %s20 = sshll.u32 %s0, 4
      %s21 = int_to_ptr.hbm [resolvable:$true] %s20
      %s22 = sshll.u32 [#allocation2], 4
      %s23 = int_to_ptr.vmem [resolvable:$true] %s22
      %25 = dma.hbm_to_vmem [thread:$0]  %s21, 32, %s23, [#allocation3]
    $region5: #{tpu_custom_call.1} parent=1 // pred_fallthru
      _
    // Predicated region
    $region6: #{tpu_custom_call.1} parent=1 // pred_check
      _
    $region7: #{tpu_custom_call.1} parent=1 // pred_check_branch
      %27 = sbr.rel (0) target = $region9
    $region8: #{tpu_custom_call.1} parent=1 // pred_region
      _
    $region9: #{tpu_custom_call.1} parent=1 // pred_fallthru
      _
    // Predicated region
    $region10: #{tpu_custom_call.1} parent=1 // pred_check
      _
    $region11: #{tpu_custom_call.1} parent=1 // pred_check_branch
      %29 = sbr.rel (0) target = $region13
    $region12: #{tpu_custom_call.1} parent=1 // pred_region
      %31 = vsyncadd [#allocation6], 0
      %s33 = sshll.u32 %s2, 4
      %s34 = int_to_ptr.hbm [resolvable:$true] %s33
      %s35 = sshll.u32 [#allocation5], 4
      %s36 = int_to_ptr.vmem [resolvable:$true] %s35
      %38 = dma.hbm_to_vmem [thread:$0]  %s34, 16, %s36, [#allocation6]
    $region13: #{tpu_custom_call.1} parent=1 // pred_fallthru
      _
    // Predicated region
    $region14: #{tpu_custom_call.1} parent=1 // pred_check
      _
    $region15: #{tpu_custom_call.1} parent=1 // pred_check_branch
      %40 = sbr.rel (0) target = $region17
    $region16: #{tpu_custom_call.1} parent=1 // pred_region
      _
    $region17: #{tpu_custom_call.1} parent=1 // pred_fallthru
      _
    // Predicated region
    $region18: #{tpu_custom_call.1} parent=1 // pred_check
      _
    $region19: #{tpu_custom_call.1} parent=1 // pred_check_branch
      %42 = sbr.rel (0) target = $region21
    $region20: #{tpu_custom_call.1} parent=1 // pred_region
      %44 = vsyncadd [#allocation6], 0
      %s46 = sshll.u32 %s4, 4
      %s47 = int_to_ptr.hbm [resolvable:$true] %s46
      %s48 = sshll.u32 [#allocation7], 4
      %s49 = int_to_ptr.vmem [resolvable:$true] %s48
      %51 = dma.hbm_to_vmem [thread:$0]  %s47, 16, %s49, [#allocation6]
    $region21: #{tpu_custom_call.1} parent=1 // pred_fallthru
      _
    // Predicated region
    $region22: #{tpu_custom_call.1} parent=1 // pred_check
      _
    $region23: #{tpu_custom_call.1} parent=1 // pred_check_branch
      %53 = sbr.rel (0) target = $region25
    $region24: #{tpu_custom_call.1} parent=1 // pred_region
      _
    $region25: #{tpu_custom_call.1} parent=1 // pred_fallthru
      _
    // Predicated region
    $region26: #{tpu_custom_call.1} parent=1 // pred_check
      _
    $region27: #{tpu_custom_call.1} parent=1 // pred_check_branch
      %55 = sbr.rel (0) target = $region29
    $region28: #{tpu_custom_call.1} parent=1 // pred_region
      _
    $region29: #{tpu_custom_call.1} parent=1 // pred_fallthru
      _
    // Predicated region
    $region30: #{tpu_custom_call.1} parent=1 // pred_check
      _
    $region31: #{tpu_custom_call.1} parent=1 // pred_check_branch
      %57 = sbr.rel (0) target = $region33
    $region32: #{tpu_custom_call.1} parent=1 // pred_region
      %59 = dma.done [#allocation3], 32
    $region33: #{tpu_custom_call.1} parent=1 // pred_fallthru
      _
    // Predicated region
    $region34: #{tpu_custom_call.1} parent=1 // pred_check
      _
    $region35: #{tpu_custom_call.1} parent=1 // pred_check_branch
      %61 = sbr.rel (0) target = $region37
    $region36: #{tpu_custom_call.1} parent=1 // pred_region
      %63 = dma.done [#allocation6], 16
    $region37: #{tpu_custom_call.1} parent=1 // pred_fallthru
      _
    // Predicated region
    $region38: #{tpu_custom_call.1} parent=1 // pred_check
      _
    $region39: #{tpu_custom_call.1} parent=1 // pred_check_branch
      %65 = sbr.rel (0) target = $region41
    $region40: #{tpu_custom_call.1} parent=1 // pred_region
      %67 = dma.done [#allocation6], 16
    $region41: #{tpu_custom_call.1} parent=1 // pred_fallthru
      _
    %v69 = vld [vmem:[#allocation2] sm:$0x3]
    %v70 = vpack.c.bf16 %v69, %v69
    %v71 = vld [vmem:[%s1] sm:$0xf]
    %v72 = vld [vmem:[#allocation5] sm:$0x1]
    %v74 = vperm.slane %v72, 0
    %vm76 = vcmask 64512
    %v78 = vsel %vm76, %v70, 0
    %vm80 = vcmask 1043456
    %v82 = vsel %vm80, %v71, 0
    %84 = vmatpush.bf16.msra.mxu0 0
    %85 = vmatpush.bf16.msra.mxu0 0
    %86 = vmatpush.bf16.msra.mxu0 0
    %87 = vmatpush.bf16.msra.mxu0 0
    %88 = vmatpush.bf16.msra.mxu0 0
    %89 = vmatpush.bf16.msra.mxu0 0
    %90 = vmatpush.bf16.msra.mxu0 0
    %91 = vmatpush.bf16.msra.mxu0 %v82
    %92 = vmatmul.bf16.gmra.mxu0 %v78
    %v93 = vpop.f32.mrf.mxu0
    %v94 = vadd.f32 %v74, %v93
    %v95 = vpop.f32.mrf.mxu0
    %96 = vdwg.mxu0
    %v97 = vmax.f32 %v94, 0.0
    %v98 = vpack.c.bf16 %v97, %v97
    %v99 = vld [vmem:[%s3] sm:$0xf]
    %v100 = vld [vmem:[%s3 + $0x4] sm:$0xf]
    %v101 = vld [vmem:[%s3 + $0x8] sm:$0xf]
    %v102 = vld [vmem:[%s3 + $0xc] sm:$0xf]
    %v103 = vld [vmem:[%s3 + $0x10] sm:$0xf]
    %v104 = vld [vmem:[%s3 + $0x14] sm:$0xf]
    %v105 = vld [vmem:[%s3 + $0x18] sm:$0xf]
    %v106 = vld [vmem:[%s3 + $0x1c] sm:$0xf]
    %v107 = vld [vmem:[%s3 + $0x20] sm:$0xf]
    %v108 = vld [vmem:[%s3 + $0x24] sm:$0xf]
    %v109 = vld [vmem:[%s3 + $0x28] sm:$0xf]
    %v110 = vld [vmem:[%s3 + $0x2c] sm:$0xf]
    %v111 = vld [vmem:[%s3 + $0x30] sm:$0xf]
    %v112 = vld [vmem:[%s3 + $0x34] sm:$0xf]
    %v113 = vld [vmem:[%s3 + $0x38] sm:$0xf]
    %v114 = vld [vmem:[%s3 + $0x3c] sm:$0xf]
    %v115 = vld [vmem:[#allocation7] sm:$0x1]
    %v117 = vperm.slane %v115, 0
    %v135 = vunpack.c.l.b16 %v99
    %v136 = vunpack.c.l.b16 %v100
    %v137 = vunpack.c.l.b16 %v101
    %v138 = vunpack.c.l.b16 %v102
    %v139 = vunpack.c.l.b16 %v103
    %v140 = vunpack.c.l.b16 %v104
    %v141 = vunpack.c.l.b16 %v105
    %v142 = vunpack.c.l.b16 %v106
    %v143 = vunpack.c.l.b16 %v107
    %v144 = vunpack.c.l.b16 %v108
    %v145 = vunpack.c.l.b16 %v109
    %v146 = vunpack.c.l.b16 %v110
    %v147 = vunpack.c.l.b16 %v111
    %v148 = vunpack.c.l.b16 %v112
    %v149 = vunpack.c.l.b16 %v113
    %v150 = vunpack.c.l.b16 %v114
    %v151 = vpack.c.b16 %v136, %v135
    %v152 = vpack.c.b16 %v138, %v137
    %v153 = vpack.c.b16 %v140, %v139
    %v154 = vpack.c.b16 %v142, %v141
    %v155 = vpack.c.b16 %v144, %v143
    %v156 = vpack.c.b16 %v146, %v145
    %v157 = vpack.c.b16 %v148, %v147
    %v158 = vpack.c.b16 %v150, %v149
    %167 = vmatpush.bf16.msra.mxu0 %v158
    %168 = vmatpush.bf16.msra.mxu0 %v157
    %169 = vmatpush.bf16.msra.mxu0 %v156
    %170 = vmatpush.bf16.msra.mxu0 %v155
    %171 = vmatpush.bf16.msra.mxu0 %v154
    %172 = vmatpush.bf16.msra.mxu0 %v153
    %173 = vmatpush.bf16.msra.mxu0 %v152
    %174 = vmatpush.bf16.msra.mxu0 %v151
    %175 = vmatmul.bf16.gmra.mxu0 %v98
    %v176 = vpop.f32.mrf.mxu0
    %v177 = vadd.f32 %v117, %v176
    %v178 = vpop.f32.mrf.mxu0
    %179 = vdwg.mxu0
    %v180 = vmax.f32 %v177, 0.0
    %v181 = vpack.c.bf16 %v180, %v180
    %v182 = vld [vmem:[%s5] sm:$0xf]
    %v183 = vld [vmem:[%s5 + $0x4] sm:$0xf]
    %v184 = vld [vmem:[%s5 + $0x8] sm:$0xf]
    %v185 = vld [vmem:[%s5 + $0xc] sm:$0xf]
    %v186 = vld [vmem:[%s5 + $0x10] sm:$0xf]
    %v187 = vld [vmem:[%s5 + $0x14] sm:$0xf]
    %v188 = vld [vmem:[%s5 + $0x18] sm:$0xf]
    %v189 = vld [vmem:[%s5 + $0x1c] sm:$0xf]
    %v190 = vld [vmem:[%s5 + $0x20] sm:$0xf]
    %v191 = vld [vmem:[%s5 + $0x24] sm:$0xf]
    %v192 = vld [vmem:[%s5 + $0x28] sm:$0xf]
    %v193 = vld [vmem:[%s5 + $0x2c] sm:$0xf]
    %v194 = vld [vmem:[%s5 + $0x30] sm:$0xf]
    %v195 = vld [vmem:[%s5 + $0x34] sm:$0xf]
    %v196 = vld [vmem:[%s5 + $0x38] sm:$0xf]
    %v197 = vld [vmem:[%s5 + $0x3c] sm:$0xf]
    %v198 = vld [vmem:[%s6] sm:$0x1]
    %v200 = vperm.slane %v198, 0
    %v218 = vunpack.c.l.b16 %v182
    %v219 = vunpack.c.l.b16 %v183
    %v220 = vunpack.c.l.b16 %v184
    %v221 = vunpack.c.l.b16 %v185
    %v222 = vunpack.c.l.b16 %v186
    %v223 = vunpack.c.l.b16 %v187
    %v224 = vunpack.c.l.b16 %v188
    %v225 = vunpack.c.l.b16 %v189
    %v226 = vunpack.c.l.b16 %v190
    %v227 = vunpack.c.l.b16 %v191
    %v228 = vunpack.c.l.b16 %v192
    %v229 = vunpack.c.l.b16 %v193
    %v230 = vunpack.c.l.b16 %v194
    %v231 = vunpack.c.l.b16 %v195
    %v232 = vunpack.c.l.b16 %v196
    %v233 = vunpack.c.l.b16 %v197
    %v234 = vpack.c.b16 %v219, %v218
    %v235 = vpack.c.b16 %v221, %v220
    %v236 = vpack.c.b16 %v223, %v222
    %v237 = vpack.c.b16 %v225, %v224
    %v238 = vpack.c.b16 %v227, %v226
    %v239 = vpack.c.b16 %v229, %v228
    %v240 = vpack.c.b16 %v231, %v230
    %v241 = vpack.c.b16 %v233, %v232
    %250 = vmatpush.bf16.msra.mxu0 %v241
    %251 = vmatpush.bf16.msra.mxu0 %v240
    %252 = vmatpush.bf16.msra.mxu0 %v239
    %253 = vmatpush.bf16.msra.mxu0 %v238
    %254 = vmatpush.bf16.msra.mxu0 %v237
    %255 = vmatpush.bf16.msra.mxu0 %v236
    %256 = vmatpush.bf16.msra.mxu0 %v235
    %257 = vmatpush.bf16.msra.mxu0 %v234
    %258 = vmatmul.bf16.gmra.mxu0 %v181
    %v259 = vpop.f32.mrf.mxu0
    %v260 = vadd.f32 %v200, %v259
    %v261 = vpop.f32.mrf.mxu0
    %262 = vdwg.mxu0
    %vm263 = vcmask 25600
    %264 = vst.msk [vmem:[#allocation8] sm:$0x3] %vm263, %v260
    // Predicated region
    $region42: #{tpu_custom_call.1} parent=1 // pred_check
      _
    $region43: #{tpu_custom_call.1} parent=1 // pred_check_branch
      %266 = sbr.rel (0) target = $region45
    $region44: #{tpu_custom_call.1} parent=1 // pred_region
      %268 = vsyncadd [#allocation4], 0
      %s270 = sshll.u32 [#allocation8], 4
      %s271 = int_to_ptr.vmem [resolvable:$true] %s270
      %s272 = sshll.u32 %s7, 4
      %s273 = int_to_ptr.hbm [resolvable:$true] %s272
      %275 = dma.vmem_to_hbm [thread:$0]  %s271, 32, %s273, [#allocation4]
    $region45: #{tpu_custom_call.1} parent=1 // pred_fallthru
      _
    // Predicated region
    $region46: #{tpu_custom_call.1} parent=1 // pred_check
      _
    $region47: #{tpu_custom_call.1} parent=1 // pred_check_branch
      %277 = sbr.rel (0) target = $region49
    $region48: #{tpu_custom_call.1} parent=1 // pred_region
      %279 = dma.done [#allocation4], 32
    $region49: #{tpu_custom_call.1} parent=1 // pred_fallthru
      _
    %280 = vsyncpa [#allocation3], 1
    %281 = vsyncpa [#allocation6], 1
    %282 = vsyncpa [#allocation4], 1

</llo_original>
